<compile_context>
chip_gen: v6e
topology: v6e:2x2x1
jax: 0.10.0
libtpu: 0.0.40
codegen_flags: <defaults>
</compile_context>

<pallas_src>
import functools

import jax
import jax.numpy as jnp
from jax import lax
from jax.experimental import pallas as pl
from jax.experimental.pallas import tpu as pltpu


def _round_up(x, m):
    return ((x + m - 1) // m) * m


def _pick_tile_n(n, c, itemsize):
    """Largest sample-tile that keeps the double-buffered logits block small."""
    budget = 8 * 1024 * 1024                 # per-operand VMEM budget (x2 buffers)
    t = budget // max(2 * c * itemsize, 1)
    t = max(8, min(1024, t))
    t = (t // 8) * 8                         # sublane-aligned
    t = min(t, _round_up(n, 8))              # never bigger than the (padded) array
    return max(t, 8)


def _focal_loss_kernel(x_ref, t_ref, out_ref, acc_ref, *,
                       gamma, alpha, n_rows, tile_n):
    # x_ref: (TILE_N, C) logits (any float dtype), t_ref: (TILE_N, 1) int32,
    # out_ref: (1, 1) f32, acc_ref: (1, 1) f32 VMEM scratch accumulator.
    i = pl.program_id(0)
    n_tiles = pl.num_programs(0)

    @pl.when(i == 0)
    def _():
        acc_ref[...] = jnp.zeros_like(acc_ref)

    x = x_ref[...].astype(jnp.float32)                       # (T, C)
    t = t_ref[...]                                           # (T, 1) int32

    # Mask for rows past the true N (last partial tile): sanitize logits so no
    # garbage reaches the transcendentals, and zero their contribution later.
    row = lax.broadcasted_iota(jnp.int32, (tile_n, 1), 0)    # (T, 1)
    valid = (i * tile_n + row) < n_rows                      # (T, 1) bool
    x = jnp.where(valid, x, 0.0)

    # Numerically-stable log-sum-exp along the class (lane) axis.
    m = jnp.max(x, axis=-1, keepdims=True)                   # (T, 1)
    e = jnp.exp(x - m)                                       # (T, C)
    s = jnp.sum(e, axis=-1, keepdims=True)                   # (T, 1)
    lse = jnp.log(s) + m                                     # (T, 1)

    # Gather the target-class logit via a one-hot select (no dynamic gather).
    col = lax.broadcasted_iota(jnp.int32, x.shape, 1)        # (T, C)
    sel = jnp.sum(jnp.where(col == t, x, 0.0), axis=-1, keepdims=True)

    ce = lse - sel                                           # per-sample CE
    # Reuse the softmax denominator for pt = softmax(x)[target] = exp(-ce).
    pt = jnp.exp(sel - m) * pl.reciprocal(s, approx=False)
    w = jnp.maximum(1.0 - pt, 0.0)                           # clamp: free insurance

    g = float(gamma)
    if g == 2.0:                                             # default: 2 VALU muls
        wg = w * w
    elif g.is_integer() and 0.0 <= g <= 8.0:
        wg = jnp.ones_like(w)
        for _ in range(int(g)):
            wg = wg * w
    else:                                                    # general: EUP pow chain
        wg = jnp.power(w, g)

    focal = (alpha * wg) * ce                                # (T, 1)
    focal = jnp.where(valid, focal, 0.0)

    acc_ref[...] += jnp.sum(focal)

    @pl.when(i == n_tiles - 1)
    def _():
        out_ref[...] = acc_ref[...] * jnp.float32(1.0 / float(n_rows))


def focal_loss(inputs, targets, gamma=2.0, alpha=0.25, tile_n=None):
    """inputs: (N, C) float logits (f32/bf16), targets: (N,) int class indices."""
    n, c = inputs.shape
    t2 = targets.astype(jnp.int32).reshape(n, 1)

    itemsize = jnp.dtype(inputs.dtype).itemsize
    if tile_n is None:
        tile_n = _pick_tile_n(n, c, itemsize)
    num_tiles = pl.cdiv(n, tile_n)

    kernel = functools.partial(
        _focal_loss_kernel,
        gamma=float(gamma), alpha=float(alpha), n_rows=n, tile_n=tile_n,
    )

    out = pl.pallas_call(
        kernel,
        out_shape=jax.ShapeDtypeStruct((1, 1), jnp.float32),
        grid=(num_tiles,),
        in_specs=[
            # logits: streamed tile-by-tile, double-buffered by BlockSpec.
            pl.BlockSpec((tile_n, c), lambda i: (i, 0)),
            # targets: tiny (TILE_N, 1) int32 tile alongside each logits tile.
            pl.BlockSpec((tile_n, 1), lambda i: (i, 0)),
        ],
        # Single (1,1) output, resident across the whole (reduction) grid axis.
        out_specs=pl.BlockSpec((1, 1), lambda i: (0, 0)),
        scratch_shapes=[pltpu.VMEM((1, 1), jnp.float32)],
        compiler_params=pltpu.CompilerParams(
            dimension_semantics=("arbitrary",),     # accumulation axis
            vmem_limit_bytes=32 * 1024 * 1024,
        ),
    )(inputs, t2)
    return out[0, 0]


def _focal_loss_ref(inputs, targets, gamma=2.0, alpha=0.25):
    # Pure-JAX reference mirroring the PyTorch module's forward.
    logp = jax.nn.log_softmax(inputs.astype(jnp.float32), axis=-1)
    ce = -jnp.take_along_axis(logp, targets[:, None].astype(jnp.int32), axis=-1)[:, 0]
    pt = jnp.exp(-ce)
    fw = alpha * (1.0 - pt) ** gamma
    return jnp.mean(fw * ce)


if __name__ == "__main__":
    key = jax.random.PRNGKey(0)
    k_x, k_t, k_x2, k_t2 = jax.random.split(key, 4)

    # Small shape consistent with the module's 2-D logits input.
    N, C = 8, 32
    inputs = jax.random.normal(k_x, (N, C), dtype=jnp.float32)
    targets = jax.random.randint(k_t, (N,), 0, C, dtype=jnp.int32)

    loss = focal_loss(inputs, targets, gamma=2.0, alpha=0.25)
    loss = jax.block_until_ready(loss)
    ref = _focal_loss_ref(inputs, targets, gamma=2.0, alpha=0.25)
    assert jnp.allclose(loss, ref, rtol=1e-4, atol=1e-6), (loss, ref)

    # Second case exercising multi-tile accumulation + partial-tile masking.
    N2, C2 = 300, 128
    inputs2 = jax.random.normal(k_x2, (N2, C2), dtype=jnp.float32)
    targets2 = jax.random.randint(k_t2, (N2,), 0, C2, dtype=jnp.int32)

    loss2 = focal_loss(inputs2, targets2, gamma=2.0, alpha=0.25, tile_n=128)
    loss2 = jax.block_until_ready(loss2)
    ref2 = _focal_loss_ref(inputs2, targets2, gamma=2.0, alpha=0.25)
    assert jnp.allclose(loss2, ref2, rtol=1e-4, atol=1e-6), (loss2, ref2)

    print("KERNEL_OK")
</pallas_src>

<mosaic_0001>
module attributes {stable_mosaic.version = 11 : i64} {
  func.func @_focal_loss_kernel(%arg0: i32, %arg1: memref<8x32xf32, #tpu.memory_space<vmem>>, %arg2: memref<8x1xi32, #tpu.memory_space<vmem>>, %arg3: memref<1x1xf32, #tpu.memory_space<vmem>>, %arg4: memref<1x1xf32, #tpu.memory_space<vmem>>) attributes {dimension_semantics = [#tpu.dimension_semantics<arbitrary>], iteration_bounds = array<i64: 1>, scalar_prefetch = 0 : i64, scratch_operands = 1 : i64, tpu.core_type = #tpu.core_type<tc>, window_params = [{transform_indices = @transform_0, window_bounds = array<i64: 8, 32>}, {transform_indices = @transform_1, window_bounds = array<i64: 8, 1>}, {pipeline_mode = #tpu.pipeline_mode<synchronous>, transform_indices = @transform_2, window_bounds = array<i64: 1, 1>}]} {
    %c0_i32 = arith.constant 0 : i32
    %0 = arith.cmpi eq, %arg0, %c0_i32 : i32
    %1 = arith.extui %0 : i1 to i32
    %c0_i32_0 = arith.constant 0 : i32
    %2 = arith.cmpi ne, %1, %c0_i32_0 : i32
    scf.if %2 {
      %cst_20 = arith.constant 0.000000e+00 : f32
      %57 = vector.broadcast %cst_20 : f32 to vector<1x1xf32>
      %c0_21 = arith.constant 0 : index
      %c0_22 = arith.constant 0 : index
      %58 = vector.load %arg4[%c0_21, %c0_22] : memref<1x1xf32, #tpu.memory_space<vmem>>, vector<1x1xf32>
      tpu.vector_store %arg4[%c0_21, %c0_22], %57 {strides = array<i32>} : memref<1x1xf32, #tpu.memory_space<vmem>>, vector<1x1xf32>,
    } else {
    }
    %c0 = arith.constant 0 : index
    %c0_1 = arith.constant 0 : index
    %3 = vector.load %arg1[%c0, %c0_1] : memref<8x32xf32, #tpu.memory_space<vmem>>, vector<8x32xf32>
    %c0_2 = arith.constant 0 : index
    %c0_3 = arith.constant 0 : index
    %4 = vector.load %arg2[%c0_2, %c0_3] : memref<8x1xi32, #tpu.memory_space<vmem>>, vector<8x1xi32>
    %5 = tpu.iota {dimensions = array<i32: 0>} : vector<8x1xi32>
    %c8_i32 = arith.constant 8 : i32
    %6 = arith.muli %arg0, %c8_i32 : i32
    %7 = vector.broadcast %6 : i32 to vector<8x1xi32>
    %8 = arith.addi %7, %5 : vector<8x1xi32>
    %c8_i32_4 = arith.constant 8 : i32
    %9 = vector.broadcast %c8_i32_4 : i32 to vector<8x1xi32>
    %10 = arith.cmpi slt, %8, %9 : vector<8x1xi32>
    %cst = arith.constant 0.000000e+00 : f32
    %11 = vector.shape_cast %10 : vector<8x1xi1> to vector<8x1xi1>
    %12 = vector.broadcast %11 : vector<8x1xi1> to vector<8x32xi1>
    %13 = vector.broadcast %cst : f32 to vector<8x32xf32>
    %14 = arith.select %12, %3, %13 : vector<8x32xi1>, vector<8x32xf32>
    %cst_5 = arith.constant dense<0xFF800000> : vector<8xf32>
    %15 = vector.multi_reduction <maximumf>, %14, %cst_5 [1] : vector<8x32xf32> to vector<8xf32>
    %16 = vector.shape_cast %15 : vector<8xf32> to vector<8x1xf32>
    %17 = vector.broadcast %16 : vector<8x1xf32> to vector<8x32xf32>
    %18 = arith.subf %14, %17 : vector<8x32xf32>
    %19 = math.exp %18 : vector<8x32xf32>
    %cst_6 = arith.constant dense<0.000000e+00> : vector<8xf32>
    %20 = vector.multi_reduction <add>, %19, %cst_6 [1] : vector<8x32xf32> to vector<8xf32>
    %21 = vector.shape_cast %20 : vector<8xf32> to vector<8x1xf32>
    %22 = math.log %21 : vector<8x1xf32>
    %23 = arith.addf %22, %16 : vector<8x1xf32>
    %24 = tpu.iota {dimensions = array<i32: 1>} : vector<8x32xi32>
    %25 = vector.broadcast %4 : vector<8x1xi32> to vector<8x32xi32>
    %26 = arith.cmpi eq, %24, %25 : vector<8x32xi32>
    %cst_7 = arith.constant 0.000000e+00 : f32
    %27 = vector.broadcast %cst_7 : f32 to vector<8x32xf32>
    %28 = arith.select %26, %14, %27 : vector<8x32xi1>, vector<8x32xf32>
    %cst_8 = arith.constant dense<0.000000e+00> : vector<8xf32>
    %29 = vector.multi_reduction <add>, %28, %cst_8 [1] : vector<8x32xf32> to vector<8xf32>
    %30 = vector.shape_cast %29 : vector<8xf32> to vector<8x1xf32>
    %31 = arith.subf %23, %30 : vector<8x1xf32>
    %32 = arith.subf %30, %16 : vector<8x1xf32>
    %33 = math.exp %32 : vector<8x1xf32>
    %34 = tpu.reciprocal %21 : vector<8x1xf32> -> vector<8x1xf32>
    %35 = arith.mulf %33, %34 : vector<8x1xf32>
    %cst_9 = arith.constant 1.000000e+00 : f32
    %36 = vector.broadcast %cst_9 : f32 to vector<8x1xf32>
    %37 = arith.subf %36, %35 : vector<8x1xf32>
    %cst_10 = arith.constant 0.000000e+00 : f32
    %38 = vector.broadcast %cst_10 : f32 to vector<8x1xf32>
    %39 = arith.maximumf %37, %38 : vector<8x1xf32>
    %40 = arith.mulf %39, %39 : vector<8x1xf32>
    %cst_11 = arith.constant 2.500000e-01 : f32
    %41 = vector.broadcast %cst_11 : f32 to vector<8x1xf32>
    %42 = arith.mulf %41, %40 : vector<8x1xf32>
    %43 = arith.mulf %42, %31 : vector<8x1xf32>
    %cst_12 = arith.constant 0.000000e+00 : f32
    %44 = vector.broadcast %cst_12 : f32 to vector<8x1xf32>
    %45 = arith.select %10, %43, %44 : vector<8x1xi1>, vector<8x1xf32>
    %c0_13 = arith.constant 0 : index
    %c0_14 = arith.constant 0 : index
    %46 = vector.load %arg4[%c0_13, %c0_14] : memref<1x1xf32, #tpu.memory_space<vmem>>, vector<1x1xf32>
    %47 = vector.shape_cast %45 : vector<8x1xf32> to vector<1x8x1xf32>
    %cst_15 = arith.constant dense<0.000000e+00> : vector<1xf32>
    %48 = vector.multi_reduction <add>, %47, %cst_15 [1, 2] : vector<1x8x1xf32> to vector<1xf32>
    %49 = vector.shape_cast %48 : vector<1xf32> to vector<1x1x1xf32>
    %50 = vector.extract %49[0, 0, 0] : f32 from vector<1x1x1xf32>
    %51 = vector.broadcast %50 : f32 to vector<1x1xf32>
    %52 = arith.addf %46, %51 : vector<1x1xf32>
    %c0_16 = arith.constant 0 : index
    %c0_17 = arith.constant 0 : index
    %53 = vector.load %arg4[%c0_16, %c0_17] : memref<1x1xf32, #tpu.memory_space<vmem>>, vector<1x1xf32>
    tpu.vector_store %arg4[%c0_16, %c0_17], %52 {strides = array<i32>} : memref<1x1xf32, #tpu.memory_space<vmem>>, vector<1x1xf32>,
    %c0_i32_18 = arith.constant 0 : i32
    %54 = arith.cmpi eq, %arg0, %c0_i32_18 : i32
    %55 = arith.extui %54 : i1 to i32
    %c0_i32_19 = arith.constant 0 : i32
    %56 = arith.cmpi ne, %55, %c0_i32_19 : i32
    scf.if %56 {
      %c0_20 = arith.constant 0 : index
      %c0_21 = arith.constant 0 : index
      %57 = vector.load %arg4[%c0_20, %c0_21] : memref<1x1xf32, #tpu.memory_space<vmem>>, vector<1x1xf32>
      %cst_22 = arith.constant 1.250000e-01 : f32
      %58 = vector.broadcast %cst_22 : f32 to vector<1x1xf32>
      %59 = arith.mulf %57, %58 : vector<1x1xf32>
      %c0_23 = arith.constant 0 : index
      %c0_24 = arith.constant 0 : index
      %60 = vector.load %arg3[%c0_23, %c0_24] : memref<1x1xf32, #tpu.memory_space<vmem>>, vector<1x1xf32>
      tpu.vector_store %arg3[%c0_23, %c0_24], %59 {strides = array<i32>} : memref<1x1xf32, #tpu.memory_space<vmem>>, vector<1x1xf32>,
    } else {
    }
    return
  }
  func.func @transform_0(%arg0: i32) -> (i32, i32) {
    %c0_i32 = arith.constant 0 : i32
    %c0_i32_0 = arith.constant 0 : i32
    return %arg0, %c0_i32 : i32, i32
  }
  func.func @transform_1(%arg0: i32) -> (i32, i32) {
    %c0_i32 = arith.constant 0 : i32
    %c0_i32_0 = arith.constant 0 : i32
    return %arg0, %c0_i32 : i32, i32
  }
  func.func @transform_2(%arg0: i32) -> (i32, i32) {
    %c0_i32 = arith.constant 0 : i32
    %c0_i32_0 = arith.constant 0 : i32
    %c0_i32_1 = arith.constant 0 : i32
    return %c0_i32, %c0_i32_0 : i32, i32
  }
}

</mosaic_0001>

<llo_original>
// kernel: tpu_custom_call.1
$region0: #{tpu_custom_call.1}
  #allocation0 [shape = 'u32[]', space=smem, size = 0x4, offset = 0x4, fixed_abs, tag = 'smem constant byte address 0x4 - core index']
  #allocation1 [shape = 'u32[144,128]{1,0:T(1,128)}', space=vmem, size = 0x12000, scoped, tag = 'internal scratch']
  #allocation2 [shape = 'f32[1,1]{1,0:T(1,128)}', space=vmem, size = 0x200, scoped, tag = 'scratch operand']
  %s0 = inlined_call_operand.vmem [shape: f32[8,32], index: 0, kind: input, shape index: {}]
  %s1 = inlined_call_operand.vmem [shape: s32[8,1], index: 1, kind: input, shape index: {}]
  %s2 = inlined_call_operand.hbm [shape: f32[1,1], index: 2, kind: output, shape index: {}]
  %s3 = sld [smem:[#allocation0]]
  $region26: #{tpu_custom_call.1} parent=0
    _
  %s5 = ssub.s32 1, %s3
  %s6 = scalar_select 0, %s5, %s3
  $region1: #{tpu_custom_call.1} parent=0
    #allocation3 [shape = 'u8[512]{0}', space=vmem, size = 0x400, scoped, tag = 'output window, operand 0, single buffered']
    #allocation4 [shape = 's32[1]{0}', space=sflag, size = 0x4, scoped, tag = 'scoped memory for tpu_custom_call.1']
    %7 = vsyncpa [#allocation4], 0
    // Predicated region
    $region2: #{tpu_custom_call.1} parent=1 // pred_check
      _
    $region3: #{tpu_custom_call.1} parent=1 // pred_check_branch
      %9 = sbr.rel (0) target = $region5
    $region4: #{tpu_custom_call.1} parent=1 // pred_region
      _
    $region5: #{tpu_custom_call.1} parent=1 // pred_fallthru
      _
    // Predicated region
    $region6: #{tpu_custom_call.1} parent=1 // pred_check
      _
    $region7: #{tpu_custom_call.1} parent=1 // pred_check_branch
      %11 = sbr.rel (0) target = $region9
    $region8: #{tpu_custom_call.1} parent=1 // pred_region
      _
    $region9: #{tpu_custom_call.1} parent=1 // pred_fallthru
      _
    %p12 = scmp.eq.s32.totalorder 0, 0
    // Predicated region
    $region10: #{tpu_custom_call.1} parent=1 // pred_check
      %p13 = pneg %p12
    $region11: #{tpu_custom_call.1} parent=1 // pred_check_branch
      %15 = sbr.rel (%p13) target = $region13
    $region12: #{tpu_custom_call.1} parent=1 // pred_region
      %vm16 = vcmask 0
      %17 = vst.msk [vmem:[#allocation2] sm:$0x1] %vm16, 0.0
    $region13: #{tpu_custom_call.1} parent=1 // pred_fallthru
      _
    %v18 = vld [vmem:[%s0] sm:$0xff]
    %v19 = vld [vmem:[%s1] sm:$0xff]
    %v20 = vlaneseq
    %v21 = vshrl.u32 %v20, 7
    %s22 = smul.u32 0, 8
    %v23 = vstv %s22
    %v24 = vadd.s32 %v23, %v21
    %vm25 = vcmp.lt.s32.totalorder %v24, 8
    %v26 = vsel %vm25, 1, 0
    %vm27 = vcmp.eq.s32.totalorder %v26, 1
    %v28 = vsel %vm27, %v18, 0.0
    %vm29 = vcmask 261120
    %v30 = vsel %vm29, %v28, -inf
    %31 = vmax.xlane.f32.xlu0 %v30
    %v32 = vpop.xlane.xlu0 %31
    %v33 = vsub.f32 %v28, %v32
    %v34 = vmul.f32 %v33, 1.442695
    %v35 = vpow.pop %v34
    %v36 = vsel %vm29, %v35, 0.0
    %37 = vadd.xlane.f32.xlu0 %v36
    %v38 = vpop.xlane.xlu0 %37
    %v39 = vlog2.pop %v38
    %v40 = vmul.f32 %v39, 0.6931472
    %v41 = vadd.f32 %v40, %v32
    %v42 = vlaneseq
    %v43 = vand.u32 %v42, 127
    %44 = vset.pattern.permute.xlu0 0
    %45 = vperm.xlu0 %44, %v19
    %v46 = vpop.permute.xlu0 %45
    %vm47 = vcmp.eq.s32.totalorder %v43, %v46
    %v48 = vsel %vm47, %v28, 0.0
    %v49 = vsel %vm29, %v48, 0.0
    %50 = vadd.xlane.f32.xlu0 %v49
    %v51 = vpop.xlane.xlu0 %50
    %v52 = vsub.f32 %v41, %v51
    %v53 = vsub.f32 %v51, %v32
    %v54 = vmul.f32 %v53, 1.442695
    %v55 = vpow.pop %v54
    %v56 = vrcp.pop %v38
    %v57 = vmul.f32 %v55, %v56
    %v58 = vsub.f32 1.0, %v57
    %v59 = vmax.f32 %v58, 0.0
    %v60 = vmul.f32 %v59, %v59
    %v61 = vmul.f32 %v60, 0.25
    %v62 = vmul.f32 %v61, %v52
    %v63 = vsel %vm25, %v62, 0.0
    %v64 = vld [vmem:[#allocation2] sm:$0x1]
    %vm65 = vcmask 7168
    %v66 = vsel %vm65, %v63, 0.0
    %67 = vadd.xlane.f32.xlu0 %v66
    %v68 = vpop.xlane.xlu0 %67
    %v69 = vrot.slane %v68, 4
    %v70 = vadd.f32 %v68, %v69
    %v71 = vrot.slane %v70, 2
    %v72 = vadd.f32 %v70, %v71
    %v73 = vrot.slane %v72, 1
    %v74 = vadd.f32 %v72, %v73
    %s75 = vtos %v74
    %v76 = vstv %s75
    %v77 = vadd.f32 %v64, %v76
    %vm78 = vcmask 0
    %79 = vst.msk [vmem:[#allocation2] sm:$0x1] %vm78, %v77
    // Predicated region
    $region14: #{tpu_custom_call.1} parent=1 // pred_check
      %p80 = pneg %p12
    $region15: #{tpu_custom_call.1} parent=1 // pred_check_branch
      %82 = sbr.rel (%p80) target = $region17
    $region16: #{tpu_custom_call.1} parent=1 // pred_region
      %v83 = vld [vmem:[#allocation2] sm:$0x1]
      %v84 = vmul.f32 %v83, 0.125
      %85 = vst.msk [vmem:[#allocation3] sm:$0x1] %vm78, %v84
    $region17: #{tpu_custom_call.1} parent=1 // pred_fallthru
      _
    // Predicated region
    $region18: #{tpu_custom_call.1} parent=1 // pred_check
      _
    $region19: #{tpu_custom_call.1} parent=1 // pred_check_branch
      %87 = sbr.rel (0) target = $region21
    $region20: #{tpu_custom_call.1} parent=1 // pred_region
      %s89 = ssub.s32 16, 16
      %90 = vsyncadd [#allocation4], %s89
      %s92 = sshll.u32 [#allocation3], 4
      %s93 = int_to_ptr.vmem [resolvable:$true] %s92
      %95 = dma.vmem_to_hbm [thread:$0]  %s93, 16, %s2, [#allocation4]
    $region21: #{tpu_custom_call.1} parent=1 // pred_fallthru
      _
    // Predicated region
    $region22: #{tpu_custom_call.1} parent=1 // pred_check
      _
    $region23: #{tpu_custom_call.1} parent=1 // pred_check_branch
      %97 = sbr.rel (0) target = $region25
    $region24: #{tpu_custom_call.1} parent=1 // pred_region
      %98 = dma.done [#allocation4], 16
    $region25: #{tpu_custom_call.1} parent=1 // pred_fallthru
      _
    %99 = vsyncpa [#allocation4], 1

</llo_original>
